<compile_context>
chip_gen: v5e
topology: v5e:2x2
jax: 0.10.0
libtpu: 0.0.40
codegen_flags: <defaults>
</compile_context>

<pallas_src>
import functools

import jax
import jax.numpy as jnp
from jax.experimental import pallas as pl
from jax.experimental.pallas import tpu as pltpu

F_IN, H1, H2, F_OUT = 30, 16, 8, 1


def cancernet_kernel(x_ref, w1_ref, b1_ref, w2_ref, b2_ref, w3c_ref, b3_ref, o_ref):
    # x tile: [TILE_B, 30], batch-major straight from HBM (no wrapper relayout).
    x = x_ref[...].astype(jnp.float32)
    # Layer 1 as an NT matmul (contract the shared 30-feature minor dim, like q @ k^T):
    # the result lands batch-on-lanes, so no explicit transpose of the big x tile is needed.
    h1 = jax.lax.dot_general(
        w1_ref[...], x, (((1,), (1,)), ((), ())),
        preferred_element_type=jnp.float32)                                  # [16, TILE_B]
    h1 = jnp.maximum(h1 + b1_ref[...], 0.0)                                  # ReLU
    h2 = jnp.dot(w2_ref[...], h1, preferred_element_type=jnp.float32)        # [8, TILE_B]
    h2 = jnp.maximum(h2 + b2_ref[...], 0.0)                                  # ReLU
    # Final 8 -> 1 layer on the VPU/XLU (broadcast-mul + 8-sublane reduce); skips an MXU
    # push/pop per grid step.  Compute is fully hidden under the x DMA anyway.
    logits = jnp.sum(h2 * w3c_ref[...], axis=0, keepdims=True) + b3_ref[0]   # [1, TILE_B]
    o_ref[...] = jax.nn.sigmoid(logits).astype(o_ref.dtype)                  # Sigmoid


def _round_up(n, m):
    return (n + m - 1) // m * m


def _vmem_capacity_bytes():
    # Generation-aware VMEM budget (v5e/v6e: 128 MiB, v7x: 64 MiB per TensorCore).
    try:
        return int(pltpu.get_tpu_info().vmem_capacity_bytes)
    except Exception:
        return 64 << 20  # conservative fallback = smallest current part (v7x)


@functools.partial(jax.jit, static_argnames=("tile_b",))
def cancernet_forward(x, params, tile_b=16384):
    """x: [B, 30]; params: PyTorch-native Linear weights/biases. Returns [B, 1] float32."""
    B = x.shape[0]

    # Lane-aligned batch tile.  Cap at ~B/2 so the "parallel" batch grid has >= 2 steps
    # whenever possible (keeps both v7x TensorCores busy); floor of one 128-lane tile.
    tile = max(128, min(_round_up(tile_b, 128), _round_up(pl.cdiv(B, 2), 128)))

    # Per-batch-row VMEM cost (bytes, f32):
    #   x block (tile, 30) padded to 128 lanes:  512 B/row, double-buffered
    #   out block (1, tile) padded to 8 sublanes: 32 B/row, double-buffered
    #   in-kernel intermediates (matmul operand relayout + h1 + h2 + logits): ~320 B/row
    per_row = 2 * (512 + 32) + 320
    fixed = 4 << 20  # resident weights + misc compiler scratch
    budget = max(16 << 20, _vmem_capacity_bytes() - (12 << 20))
    tile_max = max(128, (budget - fixed) // per_row // 128 * 128)
    tile = min(tile, tile_max)

    grid_b = pl.cdiv(B, tile)  # no batch padding for the streamed input
    if B < tile:
        # Degenerate single-block case: cheap pad (copies at most one tile of rows) keeps
        # the lone block fully in bounds.  Large batches stream unpadded; the partial tail
        # block just reads don't-care rows that are sliced off below.
        x = jnp.pad(x, ((0, tile - B), (0, 0)))

    w1 = params["w1"]                   # [16, 30]  (torch-native [out, in])
    b1 = params["b1"].reshape(H1, 1)    # [16, 1]
    w2 = params["w2"]                   # [8, 16]
    b2 = params["b2"].reshape(H2, 1)    # [8, 1]
    w3c = params["w3"].reshape(H2, 1)   # [8, 1] column (VPU mul + sublane reduce)
    b3 = params["b3"].reshape(F_OUT)    # (1,) scalar via SMEM

    vmem = pltpu.MemorySpace.VMEM
    smem = pltpu.MemorySpace.SMEM

    def resident(shape):
        # Constant index_map -> DMA'd into VMEM once, stays resident across grid steps.
        return pl.BlockSpec(shape, lambda i: (0, 0), memory_space=vmem)

    vmem_limit = int(min(budget, max(16 << 20, fixed + tile * per_row)))

    out = pl.pallas_call(
        cancernet_kernel,
        out_shape=jax.ShapeDtypeStruct((grid_b, tile), jnp.float32),
        grid=(grid_b,),
        in_specs=[
            pl.BlockSpec((tile, F_IN), lambda i: (i, 0), memory_space=vmem),  # x (streamed)
            resident((H1, F_IN)),        # w1
            resident((H1, 1)),           # b1
            resident((H2, H1)),          # w2
            resident((H2, 1)),           # b2
            resident((H2, 1)),           # w3 column
            pl.BlockSpec(memory_space=smem),  # b3 scalar
        ],
        out_specs=pl.BlockSpec((1, tile), lambda i: (i, 0), memory_space=vmem),
        compiler_params=pltpu.CompilerParams(
            dimension_semantics=("parallel",),
            vmem_limit_bytes=vmem_limit,
        ),
    )(x, w1, b1, w2, b2, w3c, b3)

    # Lane-dense [grid, tile] -> [B, 1] (matches torch module output); tail lanes from the
    # partial last block are dropped here.  Touches only ~4 B/sample.
    return out.reshape(-1)[:B].reshape(B, 1)


def init_params(key):
    """Deterministic synthetic init matching nn.Linear ([out, in] weights, [out] biases)."""
    keys = jax.random.split(key, 6)

    def uniform_fan_in(k, shape, fan_in):
        bound = 1.0 / jnp.sqrt(fan_in)
        return jax.random.uniform(k, shape, jnp.float32, -bound, bound)

    return {
        "w1": uniform_fan_in(keys[0], (H1, F_IN), float(F_IN)),   # fc1: Linear(30, 16)
        "b1": uniform_fan_in(keys[1], (H1,), float(F_IN)),
        "w2": uniform_fan_in(keys[2], (H2, H1), float(H1)),       # fc2: Linear(16, 8)
        "b2": uniform_fan_in(keys[3], (H2,), float(H1)),
        "w3": uniform_fan_in(keys[4], (F_OUT, H2), float(H2)),    # out: Linear(8, 1)
        "b3": uniform_fan_in(keys[5], (F_OUT,), float(H2)),
    }


def reference_forward(x, params):
    h1 = jnp.maximum(x @ params["w1"].T + params["b1"], 0.0)
    h2 = jnp.maximum(h1 @ params["w2"].T + params["b2"], 0.0)
    return jax.nn.sigmoid(h2 @ params["w3"].T + params["b3"])


if __name__ == "__main__":
    key = jax.random.PRNGKey(0)
    k_x, k_p = jax.random.split(key)
    params = init_params(k_p)

    # Tiny batch: degenerate single-tile path (block larger than batch, cheap pad).
    B_small = 8
    x_small = jax.random.normal(k_x, (B_small, F_IN), dtype=jnp.float32)
    out_small = jax.block_until_ready(cancernet_forward(x_small, params))
    ref_small = reference_forward(x_small, params)
    assert out_small.shape == (B_small, 1), out_small.shape
    assert jnp.allclose(out_small, ref_small, atol=1e-5, rtol=1e-5)

    # Non-multiple-of-128 batch with a small tile: multi-step pipeline + unpadded partial
    # tail block (don't-care rows sliced off).
    B_big = 1000
    x_big = jax.random.normal(k_x, (B_big, F_IN), dtype=jnp.float32)
    out_big = jax.block_until_ready(cancernet_forward(x_big, params, tile_b=256))
    ref_big = reference_forward(x_big, params)
    assert out_big.shape == (B_big, 1), out_big.shape
    assert jnp.allclose(out_big, ref_big, atol=1e-5, rtol=1e-5)

    print("KERNEL_OK")
</pallas_src>

<mosaic_0001>
module attributes {stable_mosaic.version = 11 : i64} {
  func.func @cancernet_kernel(%arg0: i32, %arg1: memref<128x30xf32, #tpu.memory_space<vmem>>, %arg2: memref<16x30xf32, #tpu.memory_space<vmem>>, %arg3: memref<16x1xf32, #tpu.memory_space<vmem>>, %arg4: memref<8x16xf32, #tpu.memory_space<vmem>>, %arg5: memref<8x1xf32, #tpu.memory_space<vmem>>, %arg6: memref<8x1xf32, #tpu.memory_space<vmem>>, %arg7: memref<1xf32, #tpu.memory_space<smem>>, %arg8: memref<1x128xf32, #tpu.memory_space<vmem>>) attributes {dimension_semantics = [#tpu.dimension_semantics<parallel>], iteration_bounds = array<i64: 1>, scalar_prefetch = 0 : i64, scratch_operands = 0 : i64, tpu.core_type = #tpu.core_type<tc>, window_params = [{transform_indices = @transform_0, window_bounds = array<i64: 128, 30>}, {pipeline_mode = #tpu.pipeline_mode<synchronous>, transform_indices = @transform_1, window_bounds = array<i64: 16, 30>}, {pipeline_mode = #tpu.pipeline_mode<synchronous>, transform_indices = @transform_2, window_bounds = array<i64: 16, 1>}, {pipeline_mode = #tpu.pipeline_mode<synchronous>, transform_indices = @transform_3, window_bounds = array<i64: 8, 16>}, {pipeline_mode = #tpu.pipeline_mode<synchronous>, transform_indices = @transform_4, window_bounds = array<i64: 8, 1>}, {pipeline_mode = #tpu.pipeline_mode<synchronous>, transform_indices = @transform_5, window_bounds = array<i64: 8, 1>}, {transform_indices = @transform_6, window_bounds = array<i64: 1>}, {transform_indices = @transform_7, window_bounds = array<i64: 1, 128>}]} {
    %c0 = arith.constant 0 : index
    %c0_0 = arith.constant 0 : index
    %0 = vector.load %arg1[%c0, %c0_0] : memref<128x30xf32, #tpu.memory_space<vmem>>, vector<128x30xf32>
    %c0_1 = arith.constant 0 : index
    %c0_2 = arith.constant 0 : index
    %1 = vector.load %arg2[%c0_1, %c0_2] : memref<16x30xf32, #tpu.memory_space<vmem>>, vector<16x30xf32>
    %cst = arith.constant dense<0.000000e+00> : vector<16x128xf32>
    %2 = tpu.matmul %1, %0, %cst {dimension_numbers = #tpu.dot_dimension_numbers<[1], [1], [0], [0], [0, 0, 1, 0], [], []>} : vector<16x30xf32>, vector<128x30xf32>, vector<16x128xf32> -> vector<16x128xf32>
    %c0_3 = arith.constant 0 : index
    %c0_4 = arith.constant 0 : index
    %3 = vector.load %arg3[%c0_3, %c0_4] : memref<16x1xf32, #tpu.memory_space<vmem>>, vector<16x1xf32>
    %4 = vector.broadcast %3 : vector<16x1xf32> to vector<16x128xf32>
    %5 = arith.addf %2, %4 : vector<16x128xf32>
    %cst_5 = arith.constant 0.000000e+00 : f32
    %6 = vector.broadcast %cst_5 : f32 to vector<16x128xf32>
    %7 = arith.maximumf %5, %6 : vector<16x128xf32>
    %c0_6 = arith.constant 0 : index
    %c0_7 = arith.constant 0 : index
    %8 = vector.load %arg4[%c0_6, %c0_7] : memref<8x16xf32, #tpu.memory_space<vmem>>, vector<8x16xf32>
    %cst_8 = arith.constant dense<0.000000e+00> : vector<8x128xf32>
    %9 = tpu.matmul %8, %7, %cst_8 {dimension_numbers = #tpu.dot_dimension_numbers<[1], [0], [0], [1], [0, 0, 1, 1], [], []>} : vector<8x16xf32>, vector<16x128xf32>, vector<8x128xf32> -> vector<8x128xf32>
    %c0_9 = arith.constant 0 : index
    %c0_10 = arith.constant 0 : index
    %10 = vector.load %arg5[%c0_9, %c0_10] : memref<8x1xf32, #tpu.memory_space<vmem>>, vector<8x1xf32>
    %11 = vector.broadcast %10 : vector<8x1xf32> to vector<8x128xf32>
    %12 = arith.addf %9, %11 : vector<8x128xf32>
    %cst_11 = arith.constant 0.000000e+00 : f32
    %13 = vector.broadcast %cst_11 : f32 to vector<8x128xf32>
    %14 = arith.maximumf %12, %13 : vector<8x128xf32>
    %c0_12 = arith.constant 0 : index
    %c0_13 = arith.constant 0 : index
    %15 = vector.load %arg6[%c0_12, %c0_13] : memref<8x1xf32, #tpu.memory_space<vmem>>, vector<8x1xf32>
    %16 = vector.broadcast %15 : vector<8x1xf32> to vector<8x128xf32>
    %17 = arith.mulf %14, %16 : vector<8x128xf32>
    %cst_14 = arith.constant dense<0.000000e+00> : vector<128xf32>
    %18 = vector.multi_reduction <add>, %17, %cst_14 [0] : vector<8x128xf32> to vector<128xf32>
    %19 = vector.shape_cast %18 : vector<128xf32> to vector<1x128xf32>
    %c0_15 = arith.constant 0 : index
    %20 = memref.load %arg7[%c0_15] : memref<1xf32, #tpu.memory_space<smem>>
    %21 = vector.broadcast %20 : f32 to vector<1x128xf32>
    %22 = arith.addf %19, %21 : vector<1x128xf32>
    %23 = arith.negf %22 : vector<1x128xf32>
    %24 = math.exp %23 : vector<1x128xf32>
    %cst_16 = arith.constant 1.000000e+00 : f32
    %25 = vector.broadcast %cst_16 : f32 to vector<1x128xf32>
    %26 = arith.addf %25, %24 : vector<1x128xf32>
    %27 = arith.divf %25, %26 : vector<1x128xf32>
    %c0_17 = arith.constant 0 : index
    %c0_18 = arith.constant 0 : index
    %28 = vector.load %arg8[%c0_17, %c0_18] : memref<1x128xf32, #tpu.memory_space<vmem>>, vector<1x128xf32>
    tpu.vector_store %arg8[%c0_17, %c0_18], %27 {strides = array<i32>} : memref<1x128xf32, #tpu.memory_space<vmem>>, vector<1x128xf32>,
    return
  }
  func.func @transform_0(%arg0: i32) -> (i32, i32) {
    %c0_i32 = arith.constant 0 : i32
    %c0_i32_0 = arith.constant 0 : i32
    return %arg0, %c0_i32 : i32, i32
  }
  func.func @transform_1(%arg0: i32) -> (i32, i32) {
    %c0_i32 = arith.constant 0 : i32
    %c0_i32_0 = arith.constant 0 : i32
    %c0_i32_1 = arith.constant 0 : i32
    return %c0_i32, %c0_i32_0 : i32, i32
  }
  func.func @transform_2(%arg0: i32) -> (i32, i32) {
    %c0_i32 = arith.constant 0 : i32
    %c0_i32_0 = arith.constant 0 : i32
    %c0_i32_1 = arith.constant 0 : i32
    return %c0_i32, %c0_i32_0 : i32, i32
  }
  func.func @transform_3(%arg0: i32) -> (i32, i32) {
    %c0_i32 = arith.constant 0 : i32
    %c0_i32_0 = arith.constant 0 : i32
    %c0_i32_1 = arith.constant 0 : i32
    return %c0_i32, %c0_i32_0 : i32, i32
  }
  func.func @transform_4(%arg0: i32) -> (i32, i32) {
    %c0_i32 = arith.constant 0 : i32
    %c0_i32_0 = arith.constant 0 : i32
    %c0_i32_1 = arith.constant 0 : i32
    return %c0_i32, %c0_i32_0 : i32, i32
  }
  func.func @transform_5(%arg0: i32) -> (i32, i32) {
    %c0_i32 = arith.constant 0 : i32
    %c0_i32_0 = arith.constant 0 : i32
    %c0_i32_1 = arith.constant 0 : i32
    return %c0_i32, %c0_i32_0 : i32, i32
  }
  func.func @transform_6(%arg0: i32) -> i32 {
    %c0_i32 = arith.constant 0 : i32
    %c0_i32_0 = arith.constant 0 : i32
    return %c0_i32 : i32
  }
  func.func @transform_7(%arg0: i32) -> (i32, i32) {
    %c0_i32 = arith.constant 0 : i32
    %c0_i32_0 = arith.constant 0 : i32
    return %arg0, %c0_i32 : i32, i32
  }
}

</mosaic_0001>

<llo_original>
// kernel: cancernet_forward.1
$region0: #{cancernet_forward.1}
  #allocation0 [shape = 'u32[]', space=smem, size = 0x4, offset = 0x4, fixed_abs, tag = 'smem constant byte address 0x4 - core index']
  #allocation1 [shape = 'u32[72,128]{1,0:T(1,128)}', space=vmem, size = 0x9000, scoped, tag = 'internal scratch']
  #allocation2 [shape = 'f32[1]{0:T(128)S(6)}', space=smem, size = 0x200, scoped, tag = 'scoped memory for cancernet_forward.1']
  %s0 = inlined_call_operand.vmem [shape: f32[128,30], index: 0, kind: input, shape index: {}]
  %s1 = inlined_call_operand.vmem [shape: f32[16,30], index: 1, kind: input, shape index: {}]
  %s2 = inlined_call_operand.vmem [shape: f32[16,1], index: 2, kind: input, shape index: {}]
  %s3 = inlined_call_operand.vmem [shape: f32[8,16], index: 3, kind: input, shape index: {}]
  %s4 = inlined_call_operand.vmem [shape: f32[8,1], index: 4, kind: input, shape index: {}]
  %s5 = inlined_call_operand.vmem [shape: f32[8,1], index: 5, kind: input, shape index: {}]
  %s6 = inlined_call_operand.<no memory space> [shape: f32[1], index: 6, kind: input, shape index: {}]
  %s7 = inlined_call_operand.vmem [shape: f32[1,128], index: 7, kind: output, shape index: {}]
  %s8 = sld [smem:[#allocation0]]
  $region38: #{cancernet_forward.1} parent=0
    _
  %s10 = ssub.s32 1, %s8
  %s11 = scalar_select 0, %s10, %s8
  %12 = sst [smem:[#allocation2]] %s6
  // Predicated region
  $region2: #{cancernet_forward.1} parent=0 // pred_check
    _
  $region3: #{cancernet_forward.1} parent=0 // pred_check_branch
    %14 = sbr.rel (0) target = $region5
  $region4: #{cancernet_forward.1} parent=0 // pred_region
    _
  $region5: #{cancernet_forward.1} parent=0 // pred_fallthru
    _
  // Predicated region
  $region6: #{cancernet_forward.1} parent=0 // pred_check
    _
  $region7: #{cancernet_forward.1} parent=0 // pred_check_branch
    %16 = sbr.rel (0) target = $region9
  $region8: #{cancernet_forward.1} parent=0 // pred_region
    _
  $region9: #{cancernet_forward.1} parent=0 // pred_fallthru
    _
  // Predicated region
  $region10: #{cancernet_forward.1} parent=0 // pred_check
    _
  $region11: #{cancernet_forward.1} parent=0 // pred_check_branch
    %18 = sbr.rel (0) target = $region13
  $region12: #{cancernet_forward.1} parent=0 // pred_region
    _
  $region13: #{cancernet_forward.1} parent=0 // pred_fallthru
    _
  // Predicated region
  $region14: #{cancernet_forward.1} parent=0 // pred_check
    _
  $region15: #{cancernet_forward.1} parent=0 // pred_check_branch
    %20 = sbr.rel (0) target = $region17
  $region16: #{cancernet_forward.1} parent=0 // pred_region
    _
  $region17: #{cancernet_forward.1} parent=0 // pred_fallthru
    _
  // Predicated region
  $region18: #{cancernet_forward.1} parent=0 // pred_check
    _
  $region19: #{cancernet_forward.1} parent=0 // pred_check_branch
    %22 = sbr.rel (0) target = $region21
  $region20: #{cancernet_forward.1} parent=0 // pred_region
    _
  $region21: #{cancernet_forward.1} parent=0 // pred_fallthru
    _
  // Predicated region
  $region22: #{cancernet_forward.1} parent=0 // pred_check
    _
  $region23: #{cancernet_forward.1} parent=0 // pred_check_branch
    %24 = sbr.rel (0) target = $region25
  $region24: #{cancernet_forward.1} parent=0 // pred_region
    _
  $region25: #{cancernet_forward.1} parent=0 // pred_fallthru
    _
  // Predicated region
  $region26: #{cancernet_forward.1} parent=0 // pred_check
    _
  $region27: #{cancernet_forward.1} parent=0 // pred_check_branch
    %26 = sbr.rel (0) target = $region29
  $region28: #{cancernet_forward.1} parent=0 // pred_region
    _
  $region29: #{cancernet_forward.1} parent=0 // pred_fallthru
    _
  %v27 = vld [vmem:[%s0] sm:$0xff]
  %v28 = vld [vmem:[%s0 + $0x8] sm:$0xff]
  %v29 = vld [vmem:[%s0 + $0x10] sm:$0xff]
  %v30 = vld [vmem:[%s0 + $0x18] sm:$0xff]
  %v31 = vld [vmem:[%s0 + $0x20] sm:$0xff]
  %v32 = vld [vmem:[%s0 + $0x28] sm:$0xff]
  %v33 = vld [vmem:[%s0 + $0x30] sm:$0xff]
  %v34 = vld [vmem:[%s0 + $0x38] sm:$0xff]
  %v35 = vld [vmem:[%s0 + $0x40] sm:$0xff]
  %v36 = vld [vmem:[%s0 + $0x48] sm:$0xff]
  %v37 = vld [vmem:[%s0 + $0x50] sm:$0xff]
  %v38 = vld [vmem:[%s0 + $0x58] sm:$0xff]
  %v39 = vld [vmem:[%s0 + $0x60] sm:$0xff]
  %v40 = vld [vmem:[%s0 + $0x68] sm:$0xff]
  %v41 = vld [vmem:[%s0 + $0x70] sm:$0xff]
  %v42 = vld [vmem:[%s0 + $0x78] sm:$0xff]
  %v43 = vld [vmem:[%s1] sm:$0xff]
  %v44 = vld [vmem:[%s1 + $0x8] sm:$0xff]
  %v45 = vld [vmem:[%s2] sm:$0xff]
  %v46 = vld [vmem:[%s2 + $0x8] sm:$0xff]
  %48 = vset.pattern.permute.xlu0 0
  %49 = vperm.xlu0 %48, %v45
  %v50 = vpop.permute.xlu0 %49
  %53 = vset.pattern.permute.xlu0 0
  %54 = vperm.xlu0 %53, %v46
  %v55 = vpop.permute.xlu0 %54
  %vm57 = vcmask 244736
  %v59 = vsel %vm57, %v43, 0
  %v62 = vsel %vm57, %v44, 0
  %v65 = vsel %vm57, %v27, 0
  %v68 = vsel %vm57, %v28, 0
  %v71 = vsel %vm57, %v29, 0
  %v74 = vsel %vm57, %v30, 0
  %v77 = vsel %vm57, %v31, 0
  %v80 = vsel %vm57, %v32, 0
  %v83 = vsel %vm57, %v33, 0
  %v86 = vsel %vm57, %v34, 0
  %v89 = vsel %vm57, %v35, 0
  %v92 = vsel %vm57, %v36, 0
  %v95 = vsel %vm57, %v37, 0
  %v98 = vsel %vm57, %v38, 0
  %v101 = vsel %vm57, %v39, 0
  %v104 = vsel %vm57, %v40, 0
  %v107 = vsel %vm57, %v41, 0
  %v110 = vsel %vm57, %v42, 0
  %112 = vmatpush.xpose.msra.mxu0 %v110
  %113 = vmatpush.xpose.msra.mxu0 %v107
  %114 = vmatpush.xpose.msra.mxu0 %v104
  %115 = vmatpush.xpose.msra.mxu0 %v101
  %116 = vmatpush.xpose.msra.mxu0 %v98
  %117 = vmatpush.xpose.msra.mxu0 %v95
  %118 = vmatpush.xpose.msra.mxu0 %v92
  %119 = vmatpush.xpose.msra.mxu0 %v89
  %120 = vmatpush.xpose.msra.mxu0 %v86
  %121 = vmatpush.xpose.msra.mxu0 %v83
  %122 = vmatpush.xpose.msra.mxu0 %v80
  %123 = vmatpush.xpose.msra.mxu0 %v77
  %124 = vmatpush.xpose.msra.mxu0 %v74
  %125 = vmatpush.xpose.msra.mxu0 %v71
  %126 = vmatpush.xpose.msra.mxu0 %v68
  %127 = vmatpush.xpose.msra.mxu0 %v65
  %128 = vmatmul.f32.gmra.mxu0 %v59
  %v129 = vpop.f32.mrf.mxu0
  %v130 = vadd.f32 %v50, %v129
  %131 = vmatmul.f32.gmra.mxu0 %v62
  %v132 = vpop.f32.mrf.mxu0
  %v133 = vadd.f32 %v55, %v132
  %134 = vdwg.mxu0
  %v135 = vmax.f32 %v130, 0.0
  %v136 = vmax.f32 %v133, 0.0
  %v137 = vld [vmem:[%s3] sm:$0xff]
  %v138 = vld [vmem:[%s4] sm:$0xff]
  %140 = vset.pattern.permute.xlu0 0
  %141 = vperm.xlu0 %140, %v138
  %v142 = vpop.permute.xlu0 %141
  %vm144 = vcmask 130048
  %v146 = vsel %vm144, %v137, 0
  %148 = vmatpush.msra.mxu0 0.0
  %149 = vmatpush.msra.mxu0 0.0
  %150 = vmatpush.msra.mxu0 0.0
  %151 = vmatpush.msra.mxu0 0.0
  %152 = vmatpush.msra.mxu0 0.0
  %153 = vmatpush.msra.mxu0 0.0
  %154 = vmatpush.msra.mxu0 0.0
  %155 = vmatpush.msra.mxu0 0.0
  %156 = vmatpush.msra.mxu0 0.0
  %157 = vmatpush.msra.mxu0 0.0
  %158 = vmatpush.msra.mxu0 0.0
  %159 = vmatpush.msra.mxu0 0.0
  %160 = vmatpush.msra.mxu0 0.0
  %161 = vmatpush.msra.mxu0 0.0
  %162 = vmatpush.msra.mxu0 %v136
  %163 = vmatpush.msra.mxu0 %v135
  %164 = vmatmul.f32.gmra.mxu0 %v146
  %v165 = vpop.f32.mrf.mxu0
  %v166 = vadd.f32 %v142, %v165
  %167 = vdwg.mxu0
  %v168 = vmax.f32 %v166, 0.0
  %v169 = vld [vmem:[%s5] sm:$0xff]
  %171 = vset.pattern.permute.xlu0 0
  %172 = vperm.xlu0 %171, %v169
  %v173 = vpop.permute.xlu0 %172
  %v175 = vmul.f32 %v168, %v173
  %v176 = vrot.slane %v175, 4
  %v177 = vadd.f32 %v175, %v176
  %v178 = vrot.slane %v177, 2
  %v179 = vadd.f32 %v177, %v178
  %v180 = vrot.slane %v179, 1
  %v181 = vadd.f32 %v179, %v180
  %s182 = sld [smem:[#allocation2]]
  %v183 = vstv %s182
  %v184 = vadd.f32 %v181, %v183
  %v185 = vxor.u32 %v184, 2147483648
  %v186 = vmul.f32 %v185, 1.442695
  %v187 = vpow.pop %v186
  %v188 = vadd.f32 %v187, 1.0
  %v189 = vrcp.pop %v188
  %v190 = vmul.f32 %v188, %v189
  %v191 = vsub.f32 1.0, %v190
  %v192 = vmul.f32 %v189, %v191
  %v193 = vadd.f32 %v189, %v192
  %vm194 = vweird.f32 %v188
  %vm195 = vweird.f32 %v189
  %vm196 = vmor %vm194, %vm195
  %v197 = vsel %vm196, %v189, %v193
  %v198 = vand.u32 2147483647, %v188
  %vm199 = vcmp.eq.f32.partialorder %v198, 8.507059e+37
  %v200 = vand.u32 %v188, 2147483648
  %v201 = vor.u32 1.1754944e-38, %v200
  %v202 = vsel %vm199, %v201, %v197
  %v203 = vmul.f32 1.0, %v202
  %204 = vst [vmem:[%s7] sm:$0x1] %v203
  // Predicated region
  $region30: #{cancernet_forward.1} parent=0 // pred_check
    _
  $region31: #{cancernet_forward.1} parent=0 // pred_check_branch
    %206 = sbr.rel (0) target = $region33
  $region32: #{cancernet_forward.1} parent=0 // pred_region
    _
  $region33: #{cancernet_forward.1} parent=0 // pred_fallthru
    _
  // Predicated region
  $region34: #{cancernet_forward.1} parent=0 // pred_check
    _
  $region35: #{cancernet_forward.1} parent=0 // pred_check_branch
    %208 = sbr.rel (0) target = $region37
  $region36: #{cancernet_forward.1} parent=0 // pred_region
    _
  $region37: #{cancernet_forward.1} parent=0 // pred_fallthru
    _

</llo_original>
